<compile_context>
chip_gen: v7x
topology: tpu7x:2x2x1
jax: 0.10.0
libtpu: 0.0.40
codegen_flags: <defaults>
</compile_context>

<pallas_src>
import functools

import jax
import jax.numpy as jnp
from jax.experimental import pallas as pl
from jax.experimental.pallas import tpu as pltpu


def _round_up(x, m):
    return ((x + m - 1) // m) * m


# ----------------------------------------------------------------------------
# Pallas kernel: fused (transposed-im2col matmul) conv + BatchNorm + activation
# ----------------------------------------------------------------------------
def conv_bn_act_kernel(w_ref, at_ref, shift_ref, o_ref, *, act):
    # w_ref:     (Cout, Kp)  bf16  conv weight, BN scale pre-folded, K zero-padded
    # at_ref:    (Kp, tm)    bf16  transposed im2col patches (spatial positions on lanes)
    # shift_ref: (Cout, 1)   f32   beta - mean * scale
    # o_ref:     (Cout, tm)  bf16  channel-major output tile (lane-dense stores)
    acc = jnp.dot(w_ref[...], at_ref[...], preferred_element_type=jnp.float32)
    y = acc + shift_ref[...]                  # f32 epilogue (v5e VPU/EUP have no bf16)
    if act == "relu":
        y = jnp.maximum(y, 0.0)
    else:                                     # "silu": sigmoid goes to the EUP slot
        y = y * jax.nn.sigmoid(y)
    o_ref[...] = y.astype(o_ref.dtype)


def conv_bn_act(at, w_scaled, shift, act, tm=2048):
    """out[N, Cout, Msp] = act(w_scaled @ at[n] + shift), tiled over (N, Msp)."""
    N, Kp, Msp = at.shape
    Cout = w_scaled.shape[0]
    tm_eff = min(tm, _round_up(Msp, 128))          # lane tile, multiple of 128
    grid = (N, pl.cdiv(Msp, tm_eff))               # ragged tail masked by Pallas
    return pl.pallas_call(
        functools.partial(conv_bn_act_kernel, act=act),
        out_shape=jax.ShapeDtypeStruct((N, Cout, Msp), jnp.bfloat16),
        grid_spec=pltpu.PrefetchScalarGridSpec(
            num_scalar_prefetch=0,
            grid=grid,
            in_specs=[
                pl.BlockSpec((Cout, Kp), lambda n, m: (0, 0)),
                pl.BlockSpec((None, Kp, tm_eff), lambda n, m: (n, 0, m)),
                pl.BlockSpec((Cout, 1), lambda n, m: (0, 0)),
            ],
            out_specs=pl.BlockSpec((None, Cout, tm_eff), lambda n, m: (n, 0, m)),
        ),
        compiler_params=pltpu.CompilerParams(
            dimension_semantics=("parallel", "parallel")),
    )(w_scaled, at, shift)


# ----------------------------------------------------------------------------
# Glue: transposed im2col (pure-JAX slicing, single concat, K padded with zero taps)
# ----------------------------------------------------------------------------
def im2col_3d_T(x, k=3, stride=(1, 2, 2), pad=(1, 1, 1)):
    # x: [N, C, T, H, W] -> A^T: [N, Kp, To*Ho*Wo], K ordered (c, kt, kh, kw)
    N, C, T, H, W = x.shape
    st, sh, sw = stride
    pt, ph, pw = pad
    xp = jnp.pad(x, ((0, 0), (0, 0), (pt, pt), (ph, ph), (pw, pw)))
    To = (T + 2 * pt - k) // st + 1
    Ho = (H + 2 * ph - k) // sh + 1
    Wo = (W + 2 * pw - k) // sw + 1
    cols = []
    for c in range(C):
        for kt in range(k):
            for kh in range(k):
                for kw in range(k):
                    cols.append(
                        xp[:, c, kt:kt + To * st:st, kh:kh + Ho * sh:sh, kw:kw + Wo * sw:sw])
    K = len(cols)
    Kp = _round_up(K, 8)
    cols.extend([jnp.zeros_like(cols[0])] * (Kp - K))   # explicit K padding (zero taps)
    at = jnp.stack(cols, axis=1).reshape(N, Kp, To * Ho * Wo)
    return at, (N, To, Ho, Wo), Kp


def im2col_2d_T(x, k=3, stride=(1, 1), pad=(1, 1)):
    # x: [N, C, H, W] -> A^T: [N, Kp, Ho*Wo], K ordered (c, kh, kw)
    N, C, H, W = x.shape
    sh, sw = stride
    ph, pw = pad
    xp = jnp.pad(x, ((0, 0), (0, 0), (ph, ph), (pw, pw)))
    Ho = (H + 2 * ph - k) // sh + 1
    Wo = (W + 2 * pw - k) // sw + 1
    cols = []
    for c in range(C):
        for kh in range(k):
            for kw in range(k):
                cols.append(xp[:, c, kh:kh + Ho * sh:sh, kw:kw + Wo * sw:sw])
    K = len(cols)
    Kp = _round_up(K, 8)
    cols.extend([jnp.zeros_like(cols[0])] * (Kp - K))
    at = jnp.stack(cols, axis=1).reshape(N, Kp, Ho * Wo)
    return at, (N, Ho, Wo), Kp


def fold_bn_into_weight(w, scale, Kp):
    # Fold BN scale into the conv weight (flattened K), zero-pad K, cast to bf16.
    Cout = w.shape[0]
    wf = w.reshape(Cout, -1).astype(jnp.float32) * scale[:, None]
    wf = jnp.pad(wf, ((0, 0), (0, Kp - wf.shape[1])))
    return wf.astype(jnp.bfloat16)


# ----------------------------------------------------------------------------
# Deterministic parameter init (shapes implied by the module's __init__)
# ----------------------------------------------------------------------------
def init_params(key):
    k3, k2 = jax.random.split(key)
    eps = 1e-5
    # ShuffleNetV2-3D stem: Conv3d(3, 24, k=3, stride=(1,2,2), pad=1) + BN + ReLU
    c3_out, c_in = 24, 3
    w3 = 0.05 * jax.random.normal(k3, (c3_out, c_in, 3, 3, 3), jnp.float32)
    g3 = jnp.ones((c3_out,), jnp.float32)
    b3 = jnp.zeros((c3_out,), jnp.float32)
    m3 = jnp.zeros((c3_out,), jnp.float32)
    v3 = jnp.ones((c3_out,), jnp.float32)
    scale3 = g3 / jnp.sqrt(v3 + eps)
    shift3 = b3 - m3 * scale3
    # YOLO/CSPDarknet 2D stem: Conv2d(3, 32, k=3, stride=1, pad=1) + BN + SiLU
    c2_out = 32
    w2 = 0.05 * jax.random.normal(k2, (c2_out, c_in, 3, 3), jnp.float32)
    g2 = jnp.ones((c2_out,), jnp.float32)
    b2 = jnp.zeros((c2_out,), jnp.float32)
    m2 = jnp.zeros((c2_out,), jnp.float32)
    v2 = jnp.ones((c2_out,), jnp.float32)
    scale2 = g2 / jnp.sqrt(v2 + eps)
    shift2 = b2 - m2 * scale2
    return {
        "w3": w3, "scale3": scale3, "shift3": shift3,
        "w2": w2, "scale2": scale2, "shift2": shift2,
    }


# ----------------------------------------------------------------------------
# YOWO forward
# ----------------------------------------------------------------------------
@jax.jit
def _yowo_features(x, params):
    # x: [N, C, T, H, W] float32 (PyTorch NCDHW); cast operands to bf16 (f32 accumulation).
    x_3d = x.astype(jnp.bfloat16)
    x_2d = x_3d[:, :, -1, :, :]                       # last temporal frame, [N, C, H, W]

    # ---- backbone_3d (ShuffleNetV2-3D) stem ----
    at3, (N, To, Ho, Wo), kp3 = im2col_3d_T(x_3d)
    w3 = fold_bn_into_weight(params["w3"], params["scale3"], kp3)
    y3 = conv_bn_act(at3, w3, params["shift3"][:, None], act="relu")
    x_3d_feat = y3.reshape(N, w3.shape[0], To, Ho, Wo)          # NCTHW, no transpose
    # TODO(synk): remaining ShuffleNetV2-3D stages (shuffle blocks, temporal reduction).

    # ---- backbone_2d (YoloBody / CSPDarknet) stem ----
    at2, (N2, Ho2, Wo2), kp2 = im2col_2d_T(x_2d)
    w2 = fold_bn_into_weight(params["w2"], params["scale2"], kp2)
    y2 = conv_bn_act(at2, w2, params["shift2"][:, None], act="silu")
    x_2d_feat = y2.reshape(N2, w2.shape[0], Ho2, Wo2)           # NCHW, no transpose
    # TODO(synk): remaining CSPDarknet stages + YOLO FPN heads (3-scale outputs).

    return x_3d_feat, x_2d_feat


def yowo_forward(x, params):
    f3, f2 = _yowo_features(x, params)
    # Original module prints x_3d / x_2d and returns 0; the print side-effect is omitted.
    return 0, f3, f2


if __name__ == "__main__":
    key = jax.random.PRNGKey(0)
    k_x, k_p = jax.random.split(key)
    # Small shapes consistent with YOWO's 5D clip input [N, C, T, H, W].
    x = jax.random.normal(k_x, (2, 3, 8, 16, 16), dtype=jnp.float32)
    params = init_params(k_p)

    ret, feat3d, feat2d = yowo_forward(x, params)
    jax.block_until_ready(feat3d)
    jax.block_until_ready(feat2d)
    assert ret == 0
    assert feat3d.shape == (2, 24, 8, 8, 8)
    assert feat2d.shape == (2, 32, 16, 16)
    print("KERNEL_OK")
</pallas_src>

<mosaic_0001>
module attributes {stable_mosaic.version = 11 : i64} {
  func.func @conv_bn_act_kernel(%arg0: i32, %arg1: i32, %arg2: memref<32x32xbf16, #tpu.memory_space<vmem>>, %arg3: memref<1x32x256xbf16, #tpu.memory_space<vmem>>, %arg4: memref<32x1xf32, #tpu.memory_space<vmem>>, %arg5: memref<1x32x256xbf16, #tpu.memory_space<vmem>>) attributes {dimension_semantics = [#tpu.dimension_semantics<parallel>, #tpu.dimension_semantics<parallel>], iteration_bounds = array<i64: 2, 1>, scalar_prefetch = 0 : i64, scratch_operands = 0 : i64, tpu.core_type = #tpu.core_type<tc>, window_params = [{pipeline_mode = #tpu.pipeline_mode<synchronous>, transform_indices = @transform_0, window_bounds = array<i64: 32, 32>}, {transform_indices = @transform_1, window_bounds = array<i64: 1, 32, 256>}, {pipeline_mode = #tpu.pipeline_mode<synchronous>, transform_indices = @transform_2, window_bounds = array<i64: 32, 1>}, {transform_indices = @transform_3, window_bounds = array<i64: 1, 32, 256>}]} {
    %c0 = arith.constant 0 : index
    %c0_0 = arith.constant 0 : index
    %0 = vector.load %arg2[%c0, %c0_0] : memref<32x32xbf16, #tpu.memory_space<vmem>>, vector<32x32xbf16>
    %c0_1 = arith.constant 0 : index
    %c0_2 = arith.constant 0 : index
    %c0_3 = arith.constant 0 : index
    %1 = vector.load %arg3[%c0_1, %c0_2, %c0_3] : memref<1x32x256xbf16, #tpu.memory_space<vmem>>, vector<1x32x256xbf16>
    %2 = vector.shape_cast %1 : vector<1x32x256xbf16> to vector<32x256xbf16>
    %cst = arith.constant dense<0.000000e+00> : vector<32x256xf32>
    %3 = tpu.matmul %0, %2, %cst {dimension_numbers = #tpu.dot_dimension_numbers<[1], [0], [0], [1], [0, 0, 1, 1], [], []>} : vector<32x32xbf16>, vector<32x256xbf16>, vector<32x256xf32> -> vector<32x256xf32>
    %c0_4 = arith.constant 0 : index
    %c0_5 = arith.constant 0 : index
    %4 = vector.load %arg4[%c0_4, %c0_5] : memref<32x1xf32, #tpu.memory_space<vmem>>, vector<32x1xf32>
    %5 = vector.broadcast %4 : vector<32x1xf32> to vector<32x256xf32>
    %6 = arith.addf %3, %5 : vector<32x256xf32>
    %7 = arith.negf %6 : vector<32x256xf32>
    %8 = math.exp %7 : vector<32x256xf32>
    %cst_6 = arith.constant 1.000000e+00 : f32
    %9 = vector.broadcast %cst_6 : f32 to vector<32x256xf32>
    %10 = arith.addf %9, %8 : vector<32x256xf32>
    %11 = arith.divf %9, %10 : vector<32x256xf32>
    %12 = arith.mulf %6, %11 : vector<32x256xf32>
    %13 = arith.truncf %12 : vector<32x256xf32> to vector<32x256xbf16>
    %c0_7 = arith.constant 0 : index
    %c0_8 = arith.constant 0 : index
    %c0_9 = arith.constant 0 : index
    %14 = vector.load %arg5[%c0_7, %c0_8, %c0_9] : memref<1x32x256xbf16, #tpu.memory_space<vmem>>, vector<1x32x256xbf16>
    %15 = vector.shape_cast %14 : vector<1x32x256xbf16> to vector<32x256xbf16>
    %16 = vector.shape_cast %13 : vector<32x256xbf16> to vector<1x32x256xbf16>
    tpu.vector_store %arg5[%c0_7, %c0_8, %c0_9], %16 {strides = array<i32>} : memref<1x32x256xbf16, #tpu.memory_space<vmem>>, vector<1x32x256xbf16>,
    return
  }
  func.func @transform_0(%arg0: i32, %arg1: i32) -> (i32, i32) {
    %c0_i32 = arith.constant 0 : i32
    %c0_i32_0 = arith.constant 0 : i32
    %c0_i32_1 = arith.constant 0 : i32
    return %c0_i32, %c0_i32_0 : i32, i32
  }
  func.func @transform_1(%arg0: i32, %arg1: i32) -> (i32, i32, i32) {
    %c0_i32 = arith.constant 0 : i32
    %c0_i32_0 = arith.constant 0 : i32
    return %arg0, %c0_i32, %arg1 : i32, i32, i32
  }
  func.func @transform_2(%arg0: i32, %arg1: i32) -> (i32, i32) {
    %c0_i32 = arith.constant 0 : i32
    %c0_i32_0 = arith.constant 0 : i32
    %c0_i32_1 = arith.constant 0 : i32
    return %c0_i32, %c0_i32_0 : i32, i32
  }
  func.func @transform_3(%arg0: i32, %arg1: i32) -> (i32, i32, i32) {
    %c0_i32 = arith.constant 0 : i32
    %c0_i32_0 = arith.constant 0 : i32
    return %arg0, %c0_i32, %arg1 : i32, i32, i32
  }
}

module attributes {stable_mosaic.version = 11 : i64} {
  func.func @conv_bn_act_kernel(%arg0: i32, %arg1: i32, %arg2: memref<24x88xbf16, #tpu.memory_space<vmem>>, %arg3: memref<1x88x512xbf16, #tpu.memory_space<vmem>>, %arg4: memref<24x1xf32, #tpu.memory_space<vmem>>, %arg5: memref<1x24x512xbf16, #tpu.memory_space<vmem>>) attributes {dimension_semantics = [#tpu.dimension_semantics<parallel>, #tpu.dimension_semantics<parallel>], iteration_bounds = array<i64: 2, 1>, scalar_prefetch = 0 : i64, scratch_operands = 0 : i64, tpu.core_type = #tpu.core_type<tc>, window_params = [{pipeline_mode = #tpu.pipeline_mode<synchronous>, transform_indices = @transform_0, window_bounds = array<i64: 24, 88>}, {transform_indices = @transform_1, window_bounds = array<i64: 1, 88, 512>}, {pipeline_mode = #tpu.pipeline_mode<synchronous>, transform_indices = @transform_2, window_bounds = array<i64: 24, 1>}, {transform_indices = @transform_3, window_bounds = array<i64: 1, 24, 512>}]} {
    %c0 = arith.constant 0 : index
    %c0_0 = arith.constant 0 : index
    %0 = vector.load %arg2[%c0, %c0_0] : memref<24x88xbf16, #tpu.memory_space<vmem>>, vector<24x88xbf16>
    %c0_1 = arith.constant 0 : index
    %c0_2 = arith.constant 0 : index
    %c0_3 = arith.constant 0 : index
    %1 = vector.load %arg3[%c0_1, %c0_2, %c0_3] : memref<1x88x512xbf16, #tpu.memory_space<vmem>>, vector<1x88x512xbf16>
    %2 = vector.shape_cast %1 : vector<1x88x512xbf16> to vector<88x512xbf16>
    %cst = arith.constant dense<0.000000e+00> : vector<24x512xf32>
    %3 = tpu.matmul %0, %2, %cst {dimension_numbers = #tpu.dot_dimension_numbers<[1], [0], [0], [1], [0, 0, 1, 1], [], []>} : vector<24x88xbf16>, vector<88x512xbf16>, vector<24x512xf32> -> vector<24x512xf32>
    %c0_4 = arith.constant 0 : index
    %c0_5 = arith.constant 0 : index
    %4 = vector.load %arg4[%c0_4, %c0_5] : memref<24x1xf32, #tpu.memory_space<vmem>>, vector<24x1xf32>
    %5 = vector.broadcast %4 : vector<24x1xf32> to vector<24x512xf32>
    %6 = arith.addf %3, %5 : vector<24x512xf32>
    %cst_6 = arith.constant 0.000000e+00 : f32
    %7 = vector.broadcast %cst_6 : f32 to vector<24x512xf32>
    %8 = arith.maximumf %6, %7 : vector<24x512xf32>
    %9 = arith.truncf %8 : vector<24x512xf32> to vector<24x512xbf16>
    %c0_7 = arith.constant 0 : index
    %c0_8 = arith.constant 0 : index
    %c0_9 = arith.constant 0 : index
    %10 = vector.load %arg5[%c0_7, %c0_8, %c0_9] : memref<1x24x512xbf16, #tpu.memory_space<vmem>>, vector<1x24x512xbf16>
    %11 = vector.shape_cast %10 : vector<1x24x512xbf16> to vector<24x512xbf16>
    %12 = vector.shape_cast %9 : vector<24x512xbf16> to vector<1x24x512xbf16>
    tpu.vector_store %arg5[%c0_7, %c0_8, %c0_9], %12 {strides = array<i32>} : memref<1x24x512xbf16, #tpu.memory_space<vmem>>, vector<1x24x512xbf16>,
    return
  }
  func.func @transform_0(%arg0: i32, %arg1: i32) -> (i32, i32) {
    %c0_i32 = arith.constant 0 : i32
    %c0_i32_0 = arith.constant 0 : i32
    %c0_i32_1 = arith.constant 0 : i32
    return %c0_i32, %c0_i32_0 : i32, i32
  }
  func.func @transform_1(%arg0: i32, %arg1: i32) -> (i32, i32, i32) {
    %c0_i32 = arith.constant 0 : i32
    %c0_i32_0 = arith.constant 0 : i32
    return %arg0, %c0_i32, %arg1 : i32, i32, i32
  }
  func.func @transform_2(%arg0: i32, %arg1: i32) -> (i32, i32) {
    %c0_i32 = arith.constant 0 : i32
    %c0_i32_0 = arith.constant 0 : i32
    %c0_i32_1 = arith.constant 0 : i32
    return %c0_i32, %c0_i32_0 : i32, i32
  }
  func.func @transform_3(%arg0: i32, %arg1: i32) -> (i32, i32, i32) {
    %c0_i32 = arith.constant 0 : i32
    %c0_i32_0 = arith.constant 0 : i32
    return %arg0, %c0_i32, %arg1 : i32, i32, i32
  }
}

</mosaic_0001>

<llo_original>
// kernel: _yowo_features.3
$region0: #{_yowo_features.3}
  #allocation0 [shape = 'u32[]', space=smem, size = 0x4, offset = 0x4, fixed_abs, tag = 'smem constant byte address 0x4 - core index']
  #allocation1 [shape = 'u32[144,128]{1,0:T(1,128)}', space=vmem, size = 0x12000, scoped, tag = 'internal scratch']
  %s0 = inlined_call_operand.vmem [shape: bf16[32,32], index: 0, kind: input, shape index: {}]
  %s1 = inlined_call_operand.vmem [shape: bf16[2,32,256], index: 1, kind: input, shape index: {}]
  %s2 = inlined_call_operand.vmem [shape: f32[32,1], index: 2, kind: input, shape index: {}]
  %s3 = inlined_call_operand.vmem [shape: bf16[2,32,256], index: 3, kind: output, shape index: {}]
  %s4 = sld [smem:[#allocation0]]
  $region45: #{_yowo_features.3} parent=0
    _
  %s6 = ssub.s32 1, %s4
  %s7 = scalar_select 0, %s6, %s4
  loop: start=0, step=1, limit=4
  $region2: #{_yowo_features.3} parent=0 // loop_pre_header
    _
  $region3: #{_yowo_features.3} parent=0 // loop_header
    %s9 = sphi 0, %s13
    %p10 = scmp.ge.s32.totalorder %s9, 4
    %s16 = sphi 0, %s28
    %s17 = sphi 0, %s24
    %s18 = sphi 0, %s16
    %s19 = sphi 0, %s17
    %s20 = sphi 0, %s18
    %s21 = sphi 0, %s19
    %s29 = sphi 0, %s29
    %s31 = sphi 0, %s29
    %s32 = sphi 0, %s31
    %s46 = sphi 0, %s32
    %s54 = sphi 0, %s56
    %s57 = sphi 0, %s54
    %s58 = sphi 0, %s57
    %s74 = sphi 0, %s58
    %s78 = sphi 0, %s78
    %s80 = sphi 0, %s78
    %s81 = sphi 0, %s80
    %s95 = sphi 0, %s81
    %s103 = sphi 0, %s105
    %s106 = sphi 0, %s103
    %s107 = sphi 0, %s106
    %s123 = sphi 0, %s107
  $region4: #{_yowo_features.3} parent=0 // loop_header_branch
    %12 = sbr.rel (%p10) target = $region8
  $region5: #{_yowo_features.3} parent=0 // loop_body
    %s14 = ssub.s32 %s9, 1
    %s15 = ssub.s32 %s9, 2
    %s22 = sadd.s32 1, %s17
    %p23 = scmp.ge.s32.totalorder %s22, 1
    %s24 = scalar_select %p23, 0, %s22
    %s25 = sadd.s32 1, %s16
    %s26 = scalar_select %p23, %s25, %s16
    %p27 = scmp.ge.s32.totalorder %s26, 2
    %s28 = scalar_select %p27, 0, %s26
    %s30 = sadd.s32 %s29, 1
    %p33 = scmp.eq.s32.totalorder %s9, 1
    %p34 = scmp.ne.s32.totalorder %s29, %s31
    %p35 = scmp.eq.s32.totalorder %s9, 0
    %p36 = por %p34, %p35
    %p37 = scmp.ne.s32.totalorder %s29, %s31
    %p38 = scmp.eq.s32.totalorder %s14, 1
    %p39 = por %p37, %p38
    %p40 = scmp.ne.s32.totalorder %s31, %s32
    %p41 = scmp.eq.s32.totalorder %s14, 0
    %p42 = por %p40, %p41
    %p43 = scmp.ne.s32.totalorder %s31, %s32
    %p44 = scmp.eq.s32.totalorder %s15, 1
    %p45 = por %p43, %p44
    %p47 = scmp.ne.s32.totalorder %s32, %s46
    %p48 = scmp.eq.s32.totalorder %s15, 0
    %p49 = por %p47, %p48
    %s50 = ssub.s32 %s16, %s28
    %s51 = ssub.s32 %s17, %s24
    %s52 = sor.u32 %s50, %s51
    %p53 = scmp.eq.s32.totalorder %s52, 0
    %s55 = sadd.s32 %s54, 1
    %s56 = scalar_select %p53, %s54, %s55
    %p59 = pneg %p53
    %p60 = scmp.eq.s32.totalorder %s9, 1
    %p61 = por %p59, %p60
    %p62 = scmp.ne.s32.totalorder %s54, %s57
    %p63 = scmp.eq.s32.totalorder %s9, 0
    %p64 = por %p62, %p63
    %p65 = scmp.ne.s32.totalorder %s54, %s57
    %p66 = scmp.eq.s32.totalorder %s14, 1
    %p67 = por %p65, %p66
    %p68 = scmp.ne.s32.totalorder %s57, %s58
    %p69 = scmp.eq.s32.totalorder %s14, 0
    %p70 = por %p68, %p69
    %p71 = scmp.ne.s32.totalorder %s57, %s58
    %p72 = scmp.eq.s32.totalorder %s15, 1
    %p73 = por %p71, %p72
    %p75 = scmp.ne.s32.totalorder %s58, %s74
    %p76 = scmp.eq.s32.totalorder %s15, 0
    %p77 = por %p75, %p76
    %s79 = sadd.s32 %s78, 1
    %p82 = scmp.eq.s32.totalorder %s9, 1
    %p83 = scmp.ne.s32.totalorder %s78, %s80
    %p84 = scmp.eq.s32.totalorder %s9, 0
    %p85 = por %p83, %p84
    %p86 = scmp.ne.s32.totalorder %s78, %s80
    %p87 = scmp.eq.s32.totalorder %s14, 1
    %p88 = por %p86, %p87
    %p89 = scmp.ne.s32.totalorder %s80, %s81
    %p90 = scmp.eq.s32.totalorder %s14, 0
    %p91 = por %p89, %p90
    %p92 = scmp.ne.s32.totalorder %s80, %s81
    %p93 = scmp.eq.s32.totalorder %s15, 1
    %p94 = por %p92, %p93
    %p96 = scmp.ne.s32.totalorder %s81, %s95
    %p97 = scmp.eq.s32.totalorder %s15, 0
    %p98 = por %p96, %p97
    %s99 = ssub.s32 %s16, %s28
    %s100 = ssub.s32 %s17, %s24
    %s101 = sor.u32 %s99, %s100
    %p102 = scmp.eq.s32.totalorder %s101, 0
    %s104 = sadd.s32 %s103, 1
    %s105 = scalar_select %p102, %s103, %s104
    %p108 = pneg %p102
    %p109 = scmp.eq.s32.totalorder %s9, 1
    %p110 = por %p108, %p109
    %p111 = scmp.ne.s32.totalorder %s103, %s106
    %p112 = scmp.eq.s32.totalorder %s9, 0
    %p113 = por %p111, %p112
    %p114 = scmp.ne.s32.totalorder %s103, %s106
    %p115 = scmp.eq.s32.totalorder %s14, 1
    %p116 = por %p114, %p115
    %p117 = scmp.ne.s32.totalorder %s106, %s107
    %p118 = scmp.eq.s32.totalorder %s14, 0
    %p119 = por %p117, %p118
    %p120 = scmp.ne.s32.totalorder %s106, %s107
    %p121 = scmp.eq.s32.totalorder %s15, 1
    %p122 = por %p120, %p121
    %p124 = scmp.ne.s32.totalorder %s107, %s123
    %p125 = scmp.eq.s32.totalorder %s15, 0
    %p126 = por %p124, %p125
    %p127 = scmp.le.s32.totalorder 1, %s9
    %p128 = scmp.lt.s32.totalorder %s9, 3
    %p129 = pnand %p127, %p128
    %p130 = pneg %p129
    // Predicated region
    $region9: #{_yowo_features.3} parent=5 // pred_check
      _
    $region10: #{_yowo_features.3} parent=5 // pred_check_branch
      %132 = sbr.rel (%p129) target = $region12
    $region11: #{_yowo_features.3} parent=5 // pred_region
      %s133 = ssub.s32 %s9, 1
      // Predicated region
      $region13: #{_yowo_features.3} parent=11 // pred_check
        %p134 = pneg %p42
      $region14: #{_yowo_features.3} parent=11 // pred_check_branch
        %136 = sbr.rel (%p134) target = $region16
      $region15: #{_yowo_features.3} parent=11 // pred_region
        _
      $region16: #{_yowo_features.3} parent=11 // pred_fallthru
        _
      // Predicated region
      $region17: #{_yowo_features.3} parent=11 // pred_check
        %p137 = pneg %p91
      $region18: #{_yowo_features.3} parent=11 // pred_check_branch
        %139 = sbr.rel (%p137) target = $region20
      $region19: #{_yowo_features.3} parent=11 // pred_region
        _
      $region20: #{_yowo_features.3} parent=11 // pred_fallthru
        _
    $region12: #{_yowo_features.3} parent=5 // pred_fallthru
      _
    %p140 = scmp.lt.s32.totalorder %s9, 2
    // Predicated region
    $region21: #{_yowo_features.3} parent=5 // pred_check
      %p141 = pneg %p140
    $region22: #{_yowo_features.3} parent=5 // pred_check_branch
      %143 = sbr.rel (%p141) target = $region24
    $region23: #{_yowo_features.3} parent=5 // pred_region
      // Predicated region
      $region25: #{_yowo_features.3} parent=23 // pred_check
        %p144 = pneg %p64
      $region26: #{_yowo_features.3} parent=23 // pred_check_branch
        %146 = sbr.rel (%p144) target = $region28
      $region27: #{_yowo_features.3} parent=23 // pred_region
        %s147 = smul.u32 2, %s17
        %p148 = scmp.lt.s32.totalorder %s16, 1
        %s149 = scalar_select %p148, %s16, 1
        %p150 = scmp.lt.s32.totalorder %s147, 1
        %s151 = scalar_select %p150, %s147, 1
        %s152 = smul.addr %s149, 8
        %s153 = sadd.s32 %s151, %s152
        %s154 = smul.addr %s153, 4
        %s155 = scalar_lea.vmem %s1, %s154
        %s156 = smul.u32 2, %s17
      $region28: #{_yowo_features.3} parent=23 // pred_fallthru
        _
    $region24: #{_yowo_features.3} parent=5 // pred_fallthru
      _
    %p157 = scmp.le.s32.totalorder 1, %s9
    %p158 = scmp.lt.s32.totalorder %s9, 3
    %p159 = pnand %p157, %p158
    %p160 = pneg %p159
    // Predicated region
    $region29: #{_yowo_features.3} parent=5 // pred_check
      _
    $region30: #{_yowo_features.3} parent=5 // pred_check_branch
      %162 = sbr.rel (%p159) target = $region32
    $region31: #{_yowo_features.3} parent=5 // pred_region
      %s163 = ssub.s32 %s9, 1
      %p164 = pneg %p42
      %p165 = pneg %p39
      %s166 = smul.u32 2, %s19
      %p167 = scmp.lt.s32.totalorder %s18, 1
      %s168 = scalar_select %p167, %s18, 1
      %p169 = scmp.lt.s32.totalorder %s166, 1
      %s170 = scalar_select %p169, %s166, 1
      %s171 = smul.addr %s168, 8
      %s172 = sadd.s32 %s170, %s171
      %s173 = smul.addr %s172, 4
      %s174 = scalar_lea.vmem %s1, %s173
      %p175 = pneg %p70
      %p176 = pneg %p67
      %p177 = pneg %p91
      %p178 = pneg %p88
      %p179 = pneg %p119
      %p180 = pneg %p116
      %s181 = smul.u32 2, %s19
      %p182 = scmp.lt.s32.totalorder %s18, 1
      %s183 = scalar_select %p182, %s18, 1
      %p184 = scmp.lt.s32.totalorder %s181, 1
      %s185 = scalar_select %p184, %s181, 1
      %s186 = smul.addr %s183, 8
      %s187 = sadd.s32 %s185, %s186
      %s188 = smul.addr %s187, 4
      %s189 = scalar_lea.vmem %s3, %s188
      %s190 = smul.u32 2, %s19
      %p191 = scmp.lt.s32.totalorder %s18, 1
      %s192 = scalar_select %p191, %s18, 1
      %p193 = scmp.lt.s32.totalorder %s190, 1
      %s194 = scalar_select %p193, %s190, 1
      %s195 = smul.addr %s192, 8
      %s196 = sadd.s32 %s194, %s195
      %s197 = smul.addr %s196, 4
      %s198 = scalar_lea.vmem %s1, %s197
      %s199 = smul.u32 2, %s19
      %s200 = smul.u32 2, %s19
      %p201 = scmp.lt.s32.totalorder %s18, 1
      %s202 = scalar_select %p201, %s18, 1
      %p203 = scmp.lt.s32.totalorder %s200, 1
      %s204 = scalar_select %p203, %s200, 1
      %s205 = smul.addr %s202, 8
      %s206 = sadd.s32 %s204, %s205
      %s207 = smul.addr %s206, 4
      %s208 = scalar_lea.vmem %s3, %s207
      %s209 = smul.u32 2, %s19
      %v211 = vld [vmem:[%s0] sm:$0xf]
      %v212 = vld [vmem:[%s0 + $0x4] sm:$0xf]
      %v213 = vld [vmem:[%s0 + $0x8] sm:$0xf]
      %v214 = vld [vmem:[%s0 + $0xc] sm:$0xf]
      %v215 = vld [vmem:[%s198] sm:$0xff]
      %v216 = vld [vmem:[%s198 + $0x8] sm:$0xff]
      %v217 = vld [vmem:[%s198 + $0x10] sm:$0xff]
      %v218 = vld [vmem:[%s198 + $0x18] sm:$0xff]
      %v219 = vld [vmem:[%s2] sm:$0xff]
      %v220 = vld [vmem:[%s2 + $0x8] sm:$0xff]
      %v221 = vld [vmem:[%s2 + $0x10] sm:$0xff]
      %v222 = vld [vmem:[%s2 + $0x18] sm:$0xff]
      %224 = vset.pattern.permute.xlu0 0
      %225 = vperm.xlu0 %224, %v219
      %v226 = vpop.permute.xlu0 %225
      %229 = vset.pattern.permute.xlu0 0
      %230 = vperm.xlu0 %229, %v220
      %v231 = vpop.permute.xlu0 %230
      %234 = vset.pattern.permute.xlu0 0
      %235 = vperm.xlu0 %234, %v221
      %v236 = vpop.permute.xlu0 %235
      %239 = vset.pattern.permute.xlu0 0
      %240 = vperm.xlu0 %239, %v222
      %v241 = vpop.permute.xlu0 %240
      %v247 = vunpack.c.l.b16 %v211
      %v248 = vunpack.c.l.b16 %v212
      %v249 = vunpack.c.l.b16 %v213
      %v250 = vunpack.c.l.b16 %v214
      %v251 = vpack.c.b16 %v248, %v247
      %v252 = vpack.c.b16 %v250, %v249
      %v257 = vunpack.c.l.b16 %v215
      %v258 = vunpack.c.h.b16 %v215
      %v259 = vunpack.c.l.b16 %v216
      %v260 = vunpack.c.h.b16 %v216
      %v261 = vunpack.c.l.b16 %v217
      %v262 = vunpack.c.h.b16 %v217
      %v263 = vunpack.c.l.b16 %v218
      %v264 = vunpack.c.h.b16 %v218
      %v265 = vpack.c.b16 %v259, %v257
      %v266 = vpack.c.b16 %v260, %v258
      %v267 = vpack.c.b16 %v263, %v261
      %v268 = vpack.c.b16 %v264, %v262
      %vm273 = vcmask 261120
      %v275 = vsel %vm273, %v251, 0
      %v278 = vsel %vm273, %v252, 0
      %280 = vmatprep.subr.bf16.mxu0 %v266
      %281 = vmatpush1.bf16.msra.mxu0 %v265
      %282 = vmatprep.subr.bf16.mxu0 %v268
      %283 = vmatpush1.bf16.msra.mxu0 %v267
      %284 = vmatprep.subr.bf16.mxu0 0
      %285 = vmatpush1.bf16.msra.mxu0 0
      %286 = vmatprep.subr.bf16.mxu0 0
      %287 = vmatpush1.bf16.msra.mxu0 0
      %288 = vmatprep.subr.bf16.mxu0 0
      %289 = vmatpush1.bf16.msra.mxu0 0
      %290 = vmatprep.subr.bf16.mxu0 0
      %291 = vmatpush1.bf16.msra.mxu0 0
      %292 = vmatprep.subr.bf16.mxu0 0
      %293 = vmatpush1.bf16.msra.mxu0 0
      %294 = vmatprep.subr.bf16.mxu0 0
      %295 = vmatpush1.bf16.msra.mxu0 0
      %296 = vmatprep.subr.bf16.mxu0 0
      %297 = vmatpush1.bf16.msra.mxu0 0
      %298 = vmatprep.subr.bf16.mxu0 0
      %299 = vmatpush1.bf16.msra.mxu0 0
      %300 = vmatprep.subr.bf16.mxu0 0
      %301 = vmatpush1.bf16.msra.mxu0 0
      %302 = vmatprep.subr.bf16.mxu0 0
      %303 = vmatpush1.bf16.msra.mxu0 0
      %304 = vmatprep.subr.bf16.mxu0 0
      %305 = vmatpush1.bf16.msra.mxu0 0
      %306 = vmatprep.subr.bf16.mxu0 0
      %307 = vmatpush1.bf16.msra.mxu0 0
      %308 = vmatprep.subr.bf16.mxu0 0
      %309 = vmatpush1.bf16.msra.mxu0 0
      %310 = vmatprep.subr.bf16.mxu0 0
      %311 = vmatpush1.bf16.msra.mxu0 0
      %312 = vmatprep.mubr.bf16.mxu0 0
      %313 = vmatmul.mubr.bf16.gmra.mrb[0].mxu0 %v275
      %v314 = vpop.f32.mrb[0].mxu0
      %v315 = vadd.f32 %v226, %v314
      %v316 = vpop.f32.mrb[0].mxu0
      %v317 = vadd.f32 %v226, %v316
      %v318 = vpop.f32.mrb[0].mxu0
      %v319 = vadd.f32 %v231, %v318
      %v320 = vpop.f32.mrb[0].mxu0
      %v321 = vadd.f32 %v231, %v320
      %322 = vmatprep.mubr.bf16.mxu0 0
      %323 = vmatmul.mubr.bf16.gmra.mrb[0].mxu0 %v278
      %v324 = vpop.f32.mrb[0].mxu0
      %v325 = vadd.f32 %v236, %v324
      %v326 = vpop.f32.mrb[0].mxu0
      %v327 = vadd.f32 %v236, %v326
      %v328 = vpop.f32.mrb[0].mxu0
      %v329 = vadd.f32 %v241, %v328
      %v330 = vpop.f32.mrb[0].mxu0
      %v331 = vadd.f32 %v241, %v330
      %332 = vdwg.mxu0
      %v333 = vxor.u32 %v315, 2147483648
      %v334 = vxor.u32 %v317, 2147483648
      %v335 = vxor.u32 %v319, 2147483648
      %v336 = vxor.u32 %v321, 2147483648
      %v337 = vxor.u32 %v325, 2147483648
      %v338 = vxor.u32 %v327, 2147483648
      %v339 = vxor.u32 %v329, 2147483648
      %v340 = vxor.u32 %v331, 2147483648
      %v341 = vmul.f32 %v333, 1.442695
      %v342 = vpow.pop %v341
      %v343 = vmul.f32 %v334, 1.442695
      %v344 = vpow.pop %v343
      %v345 = vmul.f32 %v335, 1.442695
      %v346 = vpow.pop %v345
      %v347 = vmul.f32 %v336, 1.442695
      %v348 = vpow.pop %v347
      %v349 = vmul.f32 %v337, 1.442695
      %v350 = vpow.pop %v349
      %v351 = vmul.f32 %v338, 1.442695
      %v352 = vpow.pop %v351
      %v353 = vmul.f32 %v339, 1.442695
      %v354 = vpow.pop %v353
      %v355 = vmul.f32 %v340, 1.442695
      %v356 = vpow.pop %v355
      %v357 = vadd.f32 %v342, 1.0
      %v358 = vadd.f32 %v344, 1.0
      %v359 = vadd.f32 %v346, 1.0
      %v360 = vadd.f32 %v348, 1.0
      %v361 = vadd.f32 %v350, 1.0
      %v362 = vadd.f32 %v352, 1.0
      %v363 = vadd.f32 %v354, 1.0
      %v364 = vadd.f32 %v356, 1.0
      %v365 = vrcp.pop %v357
      %v366 = vmul.f32 1.0, %v365
      %v367 = vrcp.pop %v358
      %v368 = vmul.f32 1.0, %v367
      %v369 = vrcp.pop %v359
      %v370 = vmul.f32 1.0, %v369
      %v371 = vrcp.pop %v360
      %v372 = vmul.f32 1.0, %v371
      %v373 = vrcp.pop %v361
      %v374 = vmul.f32 1.0, %v373
      %v375 = vrcp.pop %v362
      %v376 = vmul.f32 1.0, %v375
      %v377 = vrcp.pop %v363
      %v378 = vmul.f32 1.0, %v377
      %v379 = vrcp.pop %v364
      %v380 = vmul.f32 1.0, %v379
      %v381 = vmul.f32 %v315, %v366
      %v382 = vmul.f32 %v317, %v368
      %v383 = vmul.f32 %v319, %v370
      %v384 = vmul.f32 %v321, %v372
      %v385 = vmul.f32 %v325, %v374
      %v386 = vmul.f32 %v327, %v376
      %v387 = vmul.f32 %v329, %v378
      %v388 = vmul.f32 %v331, %v380
      %v389 = vpack.c.bf16 %v383, %v381
      %v390 = vpack.c.bf16 %v384, %v382
      %v391 = vpack.c.bf16 %v387, %v385
      %v392 = vpack.c.bf16 %v388, %v386
      %v397 = vunpack.c.l.b16 %v389
      %v398 = vunpack.c.l.b16 %v390
      %v399 = vunpack.c.h.b16 %v389
      %v400 = vunpack.c.h.b16 %v390
      %v401 = vunpack.c.l.b16 %v391
      %v402 = vunpack.c.l.b16 %v392
      %v403 = vunpack.c.h.b16 %v391
      %v404 = vunpack.c.h.b16 %v392
      %v405 = vpack.c.b16 %v398, %v397
      %v406 = vpack.c.b16 %v400, %v399
      %v407 = vpack.c.b16 %v402, %v401
      %v408 = vpack.c.b16 %v404, %v403
      %413 = vst [vmem:[%s208] sm:$0xff] %v405
      %414 = vst [vmem:[%s208 + $0x8] sm:$0xff] %v406
      %415 = vst [vmem:[%s208 + $0x10] sm:$0xff] %v407
      %416 = vst [vmem:[%s208 + $0x18] sm:$0xff] %v408
      %s417 = smul.u32 2, %s19
      %p418 = scmp.lt.s32.totalorder %s18, 1
      %s419 = scalar_select %p418, %s18, 1
      %p420 = scmp.lt.s32.totalorder %s417, 1
      %s421 = scalar_select %p420, %s417, 1
      %s422 = smul.addr %s419, 8
      %s423 = sadd.s32 %s421, %s422
      %s424 = smul.addr %s423, 4
      %s425 = scalar_lea.vmem %s3, %s424
      // Predicated region
      $region33: #{_yowo_features.3} parent=31 // pred_check
        %p426 = pneg %p116
      $region34: #{_yowo_features.3} parent=31 // pred_check_branch
        %428 = sbr.rel (%p426) target = $region36
      $region35: #{_yowo_features.3} parent=31 // pred_region
        %s429 = smul.u32 2, %s19
      $region36: #{_yowo_features.3} parent=31 // pred_fallthru
        _
    $region32: #{_yowo_features.3} parent=5 // pred_fallthru
      _
    %p430 = scmp.le.s32.totalorder 2, %s9
    // Predicated region
    $region37: #{_yowo_features.3} parent=5 // pred_check
      %p431 = pneg %p430
    $region38: #{_yowo_features.3} parent=5 // pred_check_branch
      %433 = sbr.rel (%p431) target = $region40
    $region39: #{_yowo_features.3} parent=5 // pred_region
      %s434 = ssub.s32 %s9, 2
      // Predicated region
      $region41: #{_yowo_features.3} parent=39 // pred_check
        %p435 = pneg %p122
      $region42: #{_yowo_features.3} parent=39 // pred_check_branch
        %437 = sbr.rel (%p435) target = $region44
      $region43: #{_yowo_features.3} parent=39 // pred_region
        %s438 = smul.u32 2, %s21
        %p439 = scmp.lt.s32.totalorder %s20, 1
        %s440 = scalar_select %p439, %s20, 1
        %p441 = scmp.lt.s32.totalorder %s438, 1
        %s442 = scalar_select %p441, %s438, 1
        %s443 = smul.addr %s440, 8
        %s444 = sadd.s32 %s442, %s443
        %s445 = smul.addr %s444, 4
        %s446 = scalar_lea.vmem %s3, %s445
      $region44: #{_yowo_features.3} parent=39 // pred_fallthru
        _
    $region40: #{_yowo_features.3} parent=5 // pred_fallthru
      _
  $region6: #{_yowo_features.3} parent=0 // loop_footer
    %s13 = sadd.s32 1, %s9
  $region7: #{_yowo_features.3} parent=0 // loop_footer_branch
    %8 = sbr.rel target = $region3
  $region8: #{_yowo_features.3} parent=0 // loop_exit
    _

// kernel: _yowo_features.2
$region0: #{_yowo_features.2}
  #allocation0 [shape = 'u32[]', space=smem, size = 0x4, offset = 0x4, fixed_abs, tag = 'smem constant byte address 0x4 - core index']
  #allocation1 [shape = 'u32[144,128]{1,0:T(1,128)}', space=vmem, size = 0x12000, scoped, tag = 'internal scratch']
  %s0 = inlined_call_operand.vmem [shape: bf16[24,88], index: 0, kind: input, shape index: {}]
  %s1 = inlined_call_operand.vmem [shape: bf16[2,88,512], index: 1, kind: input, shape index: {}]
  %s2 = inlined_call_operand.vmem [shape: f32[24,1], index: 2, kind: input, shape index: {}]
  %s3 = inlined_call_operand.vmem [shape: bf16[2,24,512], index: 3, kind: output, shape index: {}]
  %s4 = sld [smem:[#allocation0]]
  $region45: #{_yowo_features.2} parent=0
    _
  %s6 = ssub.s32 1, %s4
  %s7 = scalar_select 0, %s6, %s4
  loop: start=0, step=1, limit=4
  $region2: #{_yowo_features.2} parent=0 // loop_pre_header
    _
  $region3: #{_yowo_features.2} parent=0 // loop_header
    %s9 = sphi 0, %s13
    %p10 = scmp.ge.s32.totalorder %s9, 4
    %s16 = sphi 0, %s28
    %s17 = sphi 0, %s24
    %s18 = sphi 0, %s16
    %s19 = sphi 0, %s17
    %s20 = sphi 0, %s18
    %s21 = sphi 0, %s19
    %s29 = sphi 0, %s29
    %s31 = sphi 0, %s29
    %s32 = sphi 0, %s31
    %s46 = sphi 0, %s32
    %s54 = sphi 0, %s56
    %s57 = sphi 0, %s54
    %s58 = sphi 0, %s57
    %s74 = sphi 0, %s58
    %s78 = sphi 0, %s78
    %s80 = sphi 0, %s78
    %s81 = sphi 0, %s80
    %s95 = sphi 0, %s81
    %s103 = sphi 0, %s105
    %s106 = sphi 0, %s103
    %s107 = sphi 0, %s106
    %s123 = sphi 0, %s107
  $region4: #{_yowo_features.2} parent=0 // loop_header_branch
    %12 = sbr.rel (%p10) target = $region8
  $region5: #{_yowo_features.2} parent=0 // loop_body
    %s14 = ssub.s32 %s9, 1
    %s15 = ssub.s32 %s9, 2
    %s22 = sadd.s32 1, %s17
    %p23 = scmp.ge.s32.totalorder %s22, 1
    %s24 = scalar_select %p23, 0, %s22
    %s25 = sadd.s32 1, %s16
    %s26 = scalar_select %p23, %s25, %s16
    %p27 = scmp.ge.s32.totalorder %s26, 2
    %s28 = scalar_select %p27, 0, %s26
    %s30 = sadd.s32 %s29, 1
    %p33 = scmp.eq.s32.totalorder %s9, 1
    %p34 = scmp.ne.s32.totalorder %s29, %s31
    %p35 = scmp.eq.s32.totalorder %s9, 0
    %p36 = por %p34, %p35
    %p37 = scmp.ne.s32.totalorder %s29, %s31
    %p38 = scmp.eq.s32.totalorder %s14, 1
    %p39 = por %p37, %p38
    %p40 = scmp.ne.s32.totalorder %s31, %s32
    %p41 = scmp.eq.s32.totalorder %s14, 0
    %p42 = por %p40, %p41
    %p43 = scmp.ne.s32.totalorder %s31, %s32
    %p44 = scmp.eq.s32.totalorder %s15, 1
    %p45 = por %p43, %p44
    %p47 = scmp.ne.s32.totalorder %s32, %s46
    %p48 = scmp.eq.s32.totalorder %s15, 0
    %p49 = por %p47, %p48
    %s50 = ssub.s32 %s16, %s28
    %s51 = ssub.s32 %s17, %s24
    %s52 = sor.u32 %s50, %s51
    %p53 = scmp.eq.s32.totalorder %s52, 0
    %s55 = sadd.s32 %s54, 1
    %s56 = scalar_select %p53, %s54, %s55
    %p59 = pneg %p53
    %p60 = scmp.eq.s32.totalorder %s9, 1
    %p61 = por %p59, %p60
    %p62 = scmp.ne.s32.totalorder %s54, %s57
    %p63 = scmp.eq.s32.totalorder %s9, 0
    %p64 = por %p62, %p63
    %p65 = scmp.ne.s32.totalorder %s54, %s57
    %p66 = scmp.eq.s32.totalorder %s14, 1
    %p67 = por %p65, %p66
    %p68 = scmp.ne.s32.totalorder %s57, %s58
    %p69 = scmp.eq.s32.totalorder %s14, 0
    %p70 = por %p68, %p69
    %p71 = scmp.ne.s32.totalorder %s57, %s58
    %p72 = scmp.eq.s32.totalorder %s15, 1
    %p73 = por %p71, %p72
    %p75 = scmp.ne.s32.totalorder %s58, %s74
    %p76 = scmp.eq.s32.totalorder %s15, 0
    %p77 = por %p75, %p76
    %s79 = sadd.s32 %s78, 1
    %p82 = scmp.eq.s32.totalorder %s9, 1
    %p83 = scmp.ne.s32.totalorder %s78, %s80
    %p84 = scmp.eq.s32.totalorder %s9, 0
    %p85 = por %p83, %p84
    %p86 = scmp.ne.s32.totalorder %s78, %s80
    %p87 = scmp.eq.s32.totalorder %s14, 1
    %p88 = por %p86, %p87
    %p89 = scmp.ne.s32.totalorder %s80, %s81
    %p90 = scmp.eq.s32.totalorder %s14, 0
    %p91 = por %p89, %p90
    %p92 = scmp.ne.s32.totalorder %s80, %s81
    %p93 = scmp.eq.s32.totalorder %s15, 1
    %p94 = por %p92, %p93
    %p96 = scmp.ne.s32.totalorder %s81, %s95
    %p97 = scmp.eq.s32.totalorder %s15, 0
    %p98 = por %p96, %p97
    %s99 = ssub.s32 %s16, %s28
    %s100 = ssub.s32 %s17, %s24
    %s101 = sor.u32 %s99, %s100
    %p102 = scmp.eq.s32.totalorder %s101, 0
    %s104 = sadd.s32 %s103, 1
    %s105 = scalar_select %p102, %s103, %s104
    %p108 = pneg %p102
    %p109 = scmp.eq.s32.totalorder %s9, 1
    %p110 = por %p108, %p109
    %p111 = scmp.ne.s32.totalorder %s103, %s106
    %p112 = scmp.eq.s32.totalorder %s9, 0
    %p113 = por %p111, %p112
    %p114 = scmp.ne.s32.totalorder %s103, %s106
    %p115 = scmp.eq.s32.totalorder %s14, 1
    %p116 = por %p114, %p115
    %p117 = scmp.ne.s32.totalorder %s106, %s107
    %p118 = scmp.eq.s32.totalorder %s14, 0
    %p119 = por %p117, %p118
    %p120 = scmp.ne.s32.totalorder %s106, %s107
    %p121 = scmp.eq.s32.totalorder %s15, 1
    %p122 = por %p120, %p121
    %p124 = scmp.ne.s32.totalorder %s107, %s123
    %p125 = scmp.eq.s32.totalorder %s15, 0
    %p126 = por %p124, %p125
    %p127 = scmp.le.s32.totalorder 1, %s9
    %p128 = scmp.lt.s32.totalorder %s9, 3
    %p129 = pnand %p127, %p128
    %p130 = pneg %p129
    // Predicated region
    $region9: #{_yowo_features.2} parent=5 // pred_check
      _
    $region10: #{_yowo_features.2} parent=5 // pred_check_branch
      %132 = sbr.rel (%p129) target = $region12
    $region11: #{_yowo_features.2} parent=5 // pred_region
      %s133 = ssub.s32 %s9, 1
      // Predicated region
      $region13: #{_yowo_features.2} parent=11 // pred_check
        %p134 = pneg %p42
      $region14: #{_yowo_features.2} parent=11 // pred_check_branch
        %136 = sbr.rel (%p134) target = $region16
      $region15: #{_yowo_features.2} parent=11 // pred_region
        _
      $region16: #{_yowo_features.2} parent=11 // pred_fallthru
        _
      // Predicated region
      $region17: #{_yowo_features.2} parent=11 // pred_check
        %p137 = pneg %p91
      $region18: #{_yowo_features.2} parent=11 // pred_check_branch
        %139 = sbr.rel (%p137) target = $region20
      $region19: #{_yowo_features.2} parent=11 // pred_region
        _
      $region20: #{_yowo_features.2} parent=11 // pred_fallthru
        _
    $region12: #{_yowo_features.2} parent=5 // pred_fallthru
      _
    %p140 = scmp.lt.s32.totalorder %s9, 2
    // Predicated region
    $region21: #{_yowo_features.2} parent=5 // pred_check
      %p141 = pneg %p140
    $region22: #{_yowo_features.2} parent=5 // pred_check_branch
      %143 = sbr.rel (%p141) target = $region24
    $region23: #{_yowo_features.2} parent=5 // pred_region
      // Predicated region
      $region25: #{_yowo_features.2} parent=23 // pred_check
        %p144 = pneg %p64
      $region26: #{_yowo_features.2} parent=23 // pred_check_branch
        %146 = sbr.rel (%p144) target = $region28
      $region27: #{_yowo_features.2} parent=23 // pred_region
        %s147 = smul.u32 4, %s17
        %p148 = scmp.lt.s32.totalorder %s16, 1
        %s149 = scalar_select %p148, %s16, 1
        %p150 = scmp.lt.s32.totalorder %s147, 3
        %s151 = scalar_select %p150, %s147, 3
        %s152 = smul.addr %s149, 44
        %s153 = sadd.s32 %s151, %s152
        %s154 = smul.addr %s153, 4
        %s155 = scalar_lea.vmem %s1, %s154
        %s156 = smul.u32 4, %s17
      $region28: #{_yowo_features.2} parent=23 // pred_fallthru
        _
    $region24: #{_yowo_features.2} parent=5 // pred_fallthru
      _
    %p157 = scmp.le.s32.totalorder 1, %s9
    %p158 = scmp.lt.s32.totalorder %s9, 3
    %p159 = pnand %p157, %p158
    %p160 = pneg %p159
    // Predicated region
    $region29: #{_yowo_features.2} parent=5 // pred_check
      _
    $region30: #{_yowo_features.2} parent=5 // pred_check_branch
      %162 = sbr.rel (%p159) target = $region32
    $region31: #{_yowo_features.2} parent=5 // pred_region
      %s163 = ssub.s32 %s9, 1
      %p164 = pneg %p42
      %p165 = pneg %p39
      %s166 = smul.u32 4, %s19
      %p167 = scmp.lt.s32.totalorder %s18, 1
      %s168 = scalar_select %p167, %s18, 1
      %p169 = scmp.lt.s32.totalorder %s166, 3
      %s170 = scalar_select %p169, %s166, 3
      %s171 = smul.addr %s168, 44
      %s172 = sadd.s32 %s170, %s171
      %s173 = smul.addr %s172, 4
      %s174 = scalar_lea.vmem %s1, %s173
      %p175 = pneg %p70
      %p176 = pneg %p67
      %p177 = pneg %p91
      %p178 = pneg %p88
      %p179 = pneg %p119
      %p180 = pneg %p116
      %s181 = smul.u32 4, %s19
      %p182 = scmp.lt.s32.totalorder %s18, 1
      %s183 = scalar_select %p182, %s18, 1
      %p184 = scmp.lt.s32.totalorder %s181, 3
      %s185 = scalar_select %p184, %s181, 3
      %s186 = smul.addr %s183, 12
      %s187 = sadd.s32 %s185, %s186
      %s188 = smul.addr %s187, 4
      %s189 = scalar_lea.vmem %s3, %s188
      %s190 = smul.u32 4, %s19
      %p191 = scmp.lt.s32.totalorder %s18, 1
      %s192 = scalar_select %p191, %s18, 1
      %p193 = scmp.lt.s32.totalorder %s190, 3
      %s194 = scalar_select %p193, %s190, 3
      %s195 = smul.addr %s192, 44
      %s196 = sadd.s32 %s194, %s195
      %s197 = smul.addr %s196, 4
      %s198 = scalar_lea.vmem %s1, %s197
      %s199 = smul.u32 4, %s19
      %s200 = smul.u32 4, %s19
      %p201 = scmp.lt.s32.totalorder %s18, 1
      %s202 = scalar_select %p201, %s18, 1
      %p203 = scmp.lt.s32.totalorder %s200, 3
      %s204 = scalar_select %p203, %s200, 3
      %s205 = smul.addr %s202, 12
      %s206 = sadd.s32 %s204, %s205
      %s207 = smul.addr %s206, 4
      %s208 = scalar_lea.vmem %s3, %s207
      %s209 = smul.u32 4, %s19
      %v211 = vld [vmem:[%s0] sm:$0xf]
      %v212 = vld [vmem:[%s0 + $0x4] sm:$0xf]
      %v213 = vld [vmem:[%s0 + $0x8] sm:$0xf]
      %v214 = vld [vmem:[%s198] sm:$0xff]
      %v215 = vld [vmem:[%s198 + $0x8] sm:$0xff]
      %v216 = vld [vmem:[%s198 + $0x10] sm:$0xff]
      %v217 = vld [vmem:[%s198 + $0x18] sm:$0xff]
      %v218 = vld [vmem:[%s198 + $0x20] sm:$0xff]
      %v219 = vld [vmem:[%s198 + $0x28] sm:$0xff]
      %v220 = vld [vmem:[%s198 + $0x30] sm:$0xff]
      %v221 = vld [vmem:[%s198 + $0x38] sm:$0xff]
      %v222 = vld [vmem:[%s198 + $0x40] sm:$0xff]
      %v223 = vld [vmem:[%s198 + $0x48] sm:$0xff]
      %v224 = vld [vmem:[%s198 + $0x50] sm:$0xff]
      %v225 = vld [vmem:[%s198 + $0x58] sm:$0xff]
      %v226 = vld [vmem:[%s198 + $0x60] sm:$0xff]
      %v227 = vld [vmem:[%s198 + $0x68] sm:$0xff]
      %v228 = vld [vmem:[%s198 + $0x70] sm:$0xff]
      %v229 = vld [vmem:[%s198 + $0x78] sm:$0xff]
      %v230 = vld [vmem:[%s198 + $0x80] sm:$0xff]
      %v231 = vld [vmem:[%s198 + $0x88] sm:$0xff]
      %v232 = vld [vmem:[%s198 + $0x90] sm:$0xff]
      %v233 = vld [vmem:[%s198 + $0x98] sm:$0xff]
      %v234 = vld [vmem:[%s198 + $0xa0] sm:$0xff]
      %v235 = vld [vmem:[%s198 + $0xa8] sm:$0xff]
      %v236 = vld [vmem:[%s2] sm:$0xff]
      %v237 = vld [vmem:[%s2 + $0x8] sm:$0xff]
      %v238 = vld [vmem:[%s2 + $0x10] sm:$0xff]
      %240 = vset.pattern.permute.xlu0 0
      %241 = vperm.xlu0 %240, %v236
      %v242 = vpop.permute.xlu0 %241
      %245 = vset.pattern.permute.xlu0 0
      %246 = vperm.xlu0 %245, %v237
      %v247 = vpop.permute.xlu0 %246
      %250 = vset.pattern.permute.xlu0 0
      %251 = vperm.xlu0 %250, %v238
      %v252 = vpop.permute.xlu0 %251
      %v257 = vunpack.c.l.b16 %v211
      %v258 = vunpack.c.l.b16 %v212
      %v259 = vunpack.c.l.b16 %v213
      %v260 = vpack.c.b16 %v258, %v257
      %v261 = vpack.c.b16 %v259, %v259
      %v284 = vunpack.c.l.b16 %v214
      %v285 = vunpack.c.h.b16 %v214
      %v286 = vunpack.c.l.b16 %v215
      %v287 = vunpack.c.h.b16 %v215
      %v288 = vunpack.c.l.b16 %v216
      %v289 = vunpack.c.h.b16 %v216
      %v290 = vunpack.c.l.b16 %v217
      %v291 = vunpack.c.h.b16 %v217
      %v292 = vunpack.c.l.b16 %v218
      %v293 = vunpack.c.h.b16 %v218
      %v294 = vunpack.c.l.b16 %v219
      %v295 = vunpack.c.h.b16 %v219
      %v296 = vunpack.c.l.b16 %v220
      %v297 = vunpack.c.h.b16 %v220
      %v298 = vunpack.c.l.b16 %v221
      %v299 = vunpack.c.h.b16 %v221
      %v300 = vunpack.c.l.b16 %v222
      %v301 = vunpack.c.h.b16 %v222
      %v302 = vunpack.c.l.b16 %v223
      %v303 = vunpack.c.h.b16 %v223
      %v304 = vunpack.c.l.b16 %v224
      %v305 = vunpack.c.h.b16 %v224
      %v306 = vunpack.c.l.b16 %v225
      %v307 = vunpack.c.h.b16 %v225
      %v308 = vunpack.c.l.b16 %v226
      %v309 = vunpack.c.h.b16 %v226
      %v310 = vunpack.c.l.b16 %v227
      %v311 = vunpack.c.h.b16 %v227
      %v312 = vunpack.c.l.b16 %v228
      %v313 = vunpack.c.h.b16 %v228
      %v314 = vunpack.c.l.b16 %v229
      %v315 = vunpack.c.h.b16 %v229
      %v316 = vunpack.c.l.b16 %v230
      %v317 = vunpack.c.h.b16 %v230
      %v318 = vunpack.c.l.b16 %v231
      %v319 = vunpack.c.h.b16 %v231
      %v320 = vunpack.c.l.b16 %v232
      %v321 = vunpack.c.h.b16 %v232
      %v322 = vunpack.c.l.b16 %v233
      %v323 = vunpack.c.h.b16 %v233
      %v324 = vunpack.c.l.b16 %v234
      %v325 = vunpack.c.h.b16 %v234
      %v326 = vunpack.c.l.b16 %v235
      %v327 = vunpack.c.h.b16 %v235
      %v328 = vpack.c.b16 %v288, %v284
      %v329 = vpack.c.b16 %v289, %v285
      %v330 = vpack.c.b16 %v290, %v286
      %v331 = vpack.c.b16 %v291, %v287
      %v332 = vpack.c.b16 %v296, %v292
      %v333 = vpack.c.b16 %v297, %v293
      %v334 = vpack.c.b16 %v298, %v294
      %v335 = vpack.c.b16 %v299, %v295
      %v336 = vpack.c.b16 %v304, %v300
      %v337 = vpack.c.b16 %v305, %v301
      %v338 = vpack.c.b16 %v306, %v302
      %v339 = vpack.c.b16 %v307, %v303
      %v340 = vpack.c.b16 %v312, %v308
      %v341 = vpack.c.b16 %v313, %v309
      %v342 = vpack.c.b16 %v314, %v310
      %v343 = vpack.c.b16 %v315, %v311
      %v344 = vpack.c.b16 %v320, %v316
      %v345 = vpack.c.b16 %v321, %v317
      %v346 = vpack.c.b16 %v322, %v318
      %v347 = vpack.c.b16 %v323, %v319
      %v348 = vpack.c.b16 %v324, %v324
      %v349 = vpack.c.b16 %v325, %v325
      %v350 = vpack.c.b16 %v326, %v326
      %v351 = vpack.c.b16 %v327, %v327
      %vm372 = vcmask 719872
      %v374 = vsel %vm372, %v260, 0
      %v377 = vsel %vm372, %v261, 0
      %vm379 = vcmask 1043456
      %v381 = vsel %vm379, %v348, 0
      %v384 = vsel %vm379, %v349, 0
      %v387 = vsel %vm379, %v350, 0
      %v390 = vsel %vm379, %v351, 0
      %392 = vmatprep.subr.bf16.mxu0 %v329
      %393 = vmatpush1.bf16.msra.mxu0 %v328
      %394 = vmatprep.subr.bf16.mxu0 %v333
      %395 = vmatpush1.bf16.msra.mxu0 %v332
      %396 = vmatprep.subr.bf16.mxu0 %v337
      %397 = vmatpush1.bf16.msra.mxu0 %v336
      %398 = vmatprep.subr.bf16.mxu0 %v341
      %399 = vmatpush1.bf16.msra.mxu0 %v340
      %400 = vmatprep.subr.bf16.mxu0 %v345
      %401 = vmatpush1.bf16.msra.mxu0 %v344
      %402 = vmatprep.subr.bf16.mxu0 %v384
      %403 = vmatpush1.bf16.msra.mxu0 %v381
      %404 = vmatprep.subr.bf16.mxu0 0
      %405 = vmatpush1.bf16.msra.mxu0 0
      %406 = vmatprep.subr.bf16.mxu0 0
      %407 = vmatpush1.bf16.msra.mxu0 0
      %408 = vmatprep.subr.bf16.mxu0 0
      %409 = vmatpush1.bf16.msra.mxu0 0
      %410 = vmatprep.subr.bf16.mxu0 0
      %411 = vmatpush1.bf16.msra.mxu0 0
      %412 = vmatprep.subr.bf16.mxu0 0
      %413 = vmatpush1.bf16.msra.mxu0 0
      %414 = vmatprep.subr.bf16.mxu0 0
      %415 = vmatpush1.bf16.msra.mxu0 0
      %416 = vmatprep.subr.bf16.mxu0 0
      %417 = vmatpush1.bf16.msra.mxu0 0
      %418 = vmatprep.subr.bf16.mxu0 0
      %419 = vmatpush1.bf16.msra.mxu0 0
      %420 = vmatprep.subr.bf16.mxu0 0
      %421 = vmatpush1.bf16.msra.mxu0 0
      %422 = vmatprep.subr.bf16.mxu0 0
      %423 = vmatpush1.bf16.msra.mxu0 0
      %424 = vmatprep.mubr.bf16.mxu0 0
      %425 = vmatmul.mubr.bf16.gmra.mrb[0].mxu0 %v374
      %v426 = vpop.f32.mrb[0].mxu0
      %v427 = vadd.f32 %v242, %v426
      %v428 = vpop.f32.mrb[0].mxu0
      %v429 = vadd.f32 %v242, %v428
      %v430 = vpop.f32.mrb[0].mxu0
      %v431 = vadd.f32 %v247, %v430
      %v432 = vpop.f32.mrb[0].mxu0
      %v433 = vadd.f32 %v247, %v432
      %434 = vmatprep.mubr.bf16.mxu0 0
      %435 = vmatmul.mubr.bf16.gmra.mrb[0].mxu0 %v377
      %v436 = vpop.f32.mrb[0].mxu0
      %v437 = vadd.f32 %v252, %v436
      %v438 = vpop.f32.mrb[0].mxu0
      %v439 = vadd.f32 %v252, %v438
      %v440 = vpop.f32.mrb[0].mxu0
      %v441 = vpop.f32.mrb[0].mxu0
      %442 = vdwg.mxu0
      %443 = vmatprep.subr.bf16.mxu0 %v331
      %444 = vmatpush1.bf16.msra.mxu0 %v330
      %445 = vmatprep.subr.bf16.mxu0 %v335
      %446 = vmatpush1.bf16.msra.mxu0 %v334
      %447 = vmatprep.subr.bf16.mxu0 %v339
      %448 = vmatpush1.bf16.msra.mxu0 %v338
      %449 = vmatprep.subr.bf16.mxu0 %v343
      %450 = vmatpush1.bf16.msra.mxu0 %v342
      %451 = vmatprep.subr.bf16.mxu0 %v347
      %452 = vmatpush1.bf16.msra.mxu0 %v346
      %453 = vmatprep.subr.bf16.mxu0 %v390
      %454 = vmatpush1.bf16.msra.mxu0 %v387
      %455 = vmatprep.subr.bf16.mxu0 0
      %456 = vmatpush1.bf16.msra.mxu0 0
      %457 = vmatprep.subr.bf16.mxu0 0
      %458 = vmatpush1.bf16.msra.mxu0 0
      %459 = vmatprep.subr.bf16.mxu0 0
      %460 = vmatpush1.bf16.msra.mxu0 0
      %461 = vmatprep.subr.bf16.mxu0 0
      %462 = vmatpush1.bf16.msra.mxu0 0
      %463 = vmatprep.subr.bf16.mxu0 0
      %464 = vmatpush1.bf16.msra.mxu0 0
      %465 = vmatprep.subr.bf16.mxu0 0
      %466 = vmatpush1.bf16.msra.mxu0 0
      %467 = vmatprep.subr.bf16.mxu0 0
      %468 = vmatpush1.bf16.msra.mxu0 0
      %469 = vmatprep.subr.bf16.mxu0 0
      %470 = vmatpush1.bf16.msra.mxu0 0
      %471 = vmatprep.subr.bf16.mxu0 0
      %472 = vmatpush1.bf16.msra.mxu0 0
      %473 = vmatprep.subr.bf16.mxu0 0
      %474 = vmatpush1.bf16.msra.mxu0 0
      %475 = vmatprep.mubr.bf16.mxu0 0
      %476 = vmatmul.mubr.bf16.gmra.mrb[0].mxu0 %v374
      %v477 = vpop.f32.mrb[0].mxu0
      %v478 = vadd.f32 %v242, %v477
      %v479 = vpop.f32.mrb[0].mxu0
      %v480 = vadd.f32 %v242, %v479
      %v481 = vpop.f32.mrb[0].mxu0
      %v482 = vadd.f32 %v247, %v481
      %v483 = vpop.f32.mrb[0].mxu0
      %v484 = vadd.f32 %v247, %v483
      %485 = vmatprep.mubr.bf16.mxu0 0
      %486 = vmatmul.mubr.bf16.gmra.mrb[0].mxu0 %v377
      %v487 = vpop.f32.mrb[0].mxu0
      %v488 = vadd.f32 %v252, %v487
      %v489 = vpop.f32.mrb[0].mxu0
      %v490 = vadd.f32 %v252, %v489
      %v491 = vpop.f32.mrb[0].mxu0
      %v492 = vpop.f32.mrb[0].mxu0
      %493 = vdwg.mxu0
      %v494 = vmax.f32 %v427, 0.0
      %v495 = vmax.f32 %v429, 0.0
      %v496 = vmax.f32 %v478, 0.0
      %v497 = vmax.f32 %v480, 0.0
      %v498 = vmax.f32 %v431, 0.0
      %v499 = vmax.f32 %v433, 0.0
      %v500 = vmax.f32 %v482, 0.0
      %v501 = vmax.f32 %v484, 0.0
      %v502 = vmax.f32 %v437, 0.0
      %v503 = vmax.f32 %v439, 0.0
      %v504 = vmax.f32 %v488, 0.0
      %v505 = vmax.f32 %v490, 0.0
      %v506 = vpack.c.bf16 %v498, %v494
      %v507 = vpack.c.bf16 %v499, %v495
      %v508 = vpack.c.bf16 %v500, %v496
      %v509 = vpack.c.bf16 %v501, %v497
      %v510 = vpack.c.bf16 %v502, %v502
      %v511 = vpack.c.bf16 %v503, %v503
      %v512 = vpack.c.bf16 %v504, %v504
      %v513 = vpack.c.bf16 %v505, %v505
      %v522 = vunpack.c.l.b16 %v506
      %v523 = vunpack.c.l.b16 %v507
      %v524 = vunpack.c.l.b16 %v508
      %v525 = vunpack.c.l.b16 %v509
      %v526 = vunpack.c.h.b16 %v506
      %v527 = vunpack.c.h.b16 %v507
      %v528 = vunpack.c.h.b16 %v508
      %v529 = vunpack.c.h.b16 %v509
      %v530 = vunpack.c.l.b16 %v510
      %v531 = vunpack.c.l.b16 %v511
      %v532 = vunpack.c.l.b16 %v512
      %v533 = vunpack.c.l.b16 %v513
      %v534 = vpack.c.b16 %v523, %v522
      %v535 = vpack.c.b16 %v525, %v524
      %v536 = vpack.c.b16 %v527, %v526
      %v537 = vpack.c.b16 %v529, %v528
      %v538 = vpack.c.b16 %v531, %v530
      %v539 = vpack.c.b16 %v533, %v532
      %546 = vst [vmem:[%s208] sm:$0xff] %v534
      %547 = vst [vmem:[%s208 + $0x8] sm:$0xff] %v535
      %548 = vst [vmem:[%s208 + $0x10] sm:$0xff] %v536
      %549 = vst [vmem:[%s208 + $0x18] sm:$0xff] %v537
      %550 = vst [vmem:[%s208 + $0x20] sm:$0xff] %v538
      %551 = vst [vmem:[%s208 + $0x28] sm:$0xff] %v539
      %s552 = smul.u32 4, %s19
      %p553 = scmp.lt.s32.totalorder %s18, 1
      %s554 = scalar_select %p553, %s18, 1
      %p555 = scmp.lt.s32.totalorder %s552, 3
      %s556 = scalar_select %p555, %s552, 3
      %s557 = smul.addr %s554, 12
      %s558 = sadd.s32 %s556, %s557
      %s559 = smul.addr %s558, 4
      %s560 = scalar_lea.vmem %s3, %s559
      // Predicated region
      $region33: #{_yowo_features.2} parent=31 // pred_check
        %p561 = pneg %p116
      $region34: #{_yowo_features.2} parent=31 // pred_check_branch
        %563 = sbr.rel (%p561) target = $region36
      $region35: #{_yowo_features.2} parent=31 // pred_region
        %s564 = smul.u32 4, %s19
      $region36: #{_yowo_features.2} parent=31 // pred_fallthru
        _
    $region32: #{_yowo_features.2} parent=5 // pred_fallthru
      _
    %p565 = scmp.le.s32.totalorder 2, %s9
    // Predicated region
    $region37: #{_yowo_features.2} parent=5 // pred_check
      %p566 = pneg %p565
    $region38: #{_yowo_features.2} parent=5 // pred_check_branch
      %568 = sbr.rel (%p566) target = $region40
    $region39: #{_yowo_features.2} parent=5 // pred_region
      %s569 = ssub.s32 %s9, 2
      // Predicated region
      $region41: #{_yowo_features.2} parent=39 // pred_check
        %p570 = pneg %p122
      $region42: #{_yowo_features.2} parent=39 // pred_check_branch
        %572 = sbr.rel (%p570) target = $region44
      $region43: #{_yowo_features.2} parent=39 // pred_region
        %s573 = smul.u32 4, %s21
        %p574 = scmp.lt.s32.totalorder %s20, 1
        %s575 = scalar_select %p574, %s20, 1
        %p576 = scmp.lt.s32.totalorder %s573, 3
        %s577 = scalar_select %p576, %s573, 3
        %s578 = smul.addr %s575, 12
        %s579 = sadd.s32 %s577, %s578
        %s580 = smul.addr %s579, 4
        %s581 = scalar_lea.vmem %s3, %s580
      $region44: #{_yowo_features.2} parent=39 // pred_fallthru
        _
    $region40: #{_yowo_features.2} parent=5 // pred_fallthru
      _
  $region6: #{_yowo_features.2} parent=0 // loop_footer
    %s13 = sadd.s32 1, %s9
  $region7: #{_yowo_features.2} parent=0 // loop_footer_branch
    %8 = sbr.rel target = $region3
  $region8: #{_yowo_features.2} parent=0 // loop_exit
    _

</llo_original>
